<compile_context>
chip_gen: v7x
topology: tpu7x:2x2x1
jax: 0.10.0
libtpu: 0.0.40
codegen_flags: <defaults>
</compile_context>

<pallas_src>
import jax
import jax.numpy as jnp
from jax.experimental import pallas as pl
from jax.experimental.pallas import tpu as pltpu


def critic_mlp_kernel(x_ref, w1_ref, b1_ref, w2_ref, b2_ref, w3_ref, b3_ref,
                      o_ref):
    cd = w1_ref.dtype                                  # matmul operand dtype

    # ---- Layer 1: single fused matmul over the concatenated (obs,act) tile.
    x = x_ref[...].astype(cd)                          # in-kernel cast (VPU)
    h1 = jnp.dot(x, w1_ref[...], preferred_element_type=jnp.float32)
    h1 = jnp.maximum(h1 + b1_ref[...], 0.0)            # bias + ReLU in f32

    # ---- Layer 2 ----
    h2 = jnp.dot(h1.astype(cd), w2_ref[...],
                 preferred_element_type=jnp.float32)
    h2 = jnp.maximum(h2 + b2_ref[...], 0.0)            # bias + ReLU in f32

    # ---- Layer 3 (out_features == 1) ----
    # VPU multiply, lane reduce to a (TB,1) column, then transpose ONLY the
    # skinny column to the lane-dense (1, TB) output row.
    contrib = h2 * w3_ref[...]                         # (TB, H2) * (1, H2)
    q_col = jnp.sum(contrib, axis=1, keepdims=True)    # (TB, 1)
    o_ref[...] = q_col.T + b3_ref[...]                 # (1, TB), no output act


def _round_up(x, m):
    return ((x + m - 1) // m) * m


def critic_forward(obs_all, act_all, params, *, batch_tile=2048,
                   compute_dtype=jnp.bfloat16):
    """Pallas Critic forward.

    obs_all: (B, obs_dim), act_all: (B, act_dim), returns (B, 1) float32.
    compute_dtype controls the matmul operand dtype (bf16 = native MXU rate);
    accumulation and bias/ReLU stay in float32.
    """
    w1, b1, w2, b2, w3, b3 = params
    B = obs_all.shape[0]
    H2 = w2.shape[1]
    w3_row = w3.reshape(1, H2)                         # (H2,1) -> (1,H2), f32

    # Fused layer-1 input: one (B, obs_dim+act_dim) array -> one K-pass matmul.
    x = jnp.concatenate([obs_all, act_all], axis=-1).astype(jnp.float32)
    d_in = x.shape[1]

    # Batch tiling: pad to a multiple of 128 (lane-dense output).  For
    # batches >= 256 rows force at least two tiles (v7x megacore sharding),
    # each a multiple of 128 rows, capped at `batch_tile`.
    B_lane = _round_up(B, 128)
    tb_max = max(128, _round_up(batch_tile, 128))
    if B_lane <= 128:
        tb = B_lane
    else:
        tb = min(tb_max, _round_up(pl.cdiv(B_lane, 2), 128))
    B_pad = _round_up(B_lane, tb)

    if B_pad != B:
        # TODO(synk): a masked/short final tile would avoid this HBM pad copy;
        # kept simple since it is a single cheap pass over a (B, ~16) array.
        x = jnp.pad(x, ((0, B_pad - B), (0, 0)))

    cd = compute_dtype
    w1_c = w1.astype(cd)
    w2_c = w2.astype(cd)

    grid = (B_pad // tb,)

    def const_spec(arr):
        # Full-array block, same block every grid step; single-buffered since
        # it never changes (halves its VMEM footprint, no dead DMAs).
        return pl.BlockSpec(arr.shape, lambda i: (0,) * arr.ndim,
                            pipeline_mode=pl.Buffered(1))

    q_t = pl.pallas_call(
        critic_mlp_kernel,
        out_shape=jax.ShapeDtypeStruct((1, B_pad), jnp.float32),
        grid_spec=pltpu.PrefetchScalarGridSpec(
            num_scalar_prefetch=0,
            grid=grid,
            in_specs=[
                pl.BlockSpec((tb, d_in), lambda i: (i, 0)),     # x tile (f32)
                const_spec(w1_c), const_spec(b1),
                const_spec(w2_c), const_spec(b2),
                const_spec(w3_row), const_spec(b3),
            ],
            # Lane-dense transposed output: batch mapped to the lane axis.
            out_specs=pl.BlockSpec((1, tb), lambda i: (0, i)),
        ),
        compiler_params=pltpu.CompilerParams(
            dimension_semantics=("parallel",)),
    )(x, w1_c, b1, w2_c, b2, w3_row, b3)

    # (1, B_pad) -> (B, 1) (pure layout plumbing in the wrapper).
    return q_t.reshape(B_pad, 1)[:B]


def init_critic_params(key, total_obs_dim, total_act_dim,
                       hidden_sizes=(256, 256)):
    """Deterministic synthetic parameter init (shapes match nn.Linear layers).

    Weights stored as [in_features, out_features] (= transpose of torch's
    storage), biases as [1, out_features]; math identical to F.linear.
    """
    d_in = total_obs_dim + total_act_dim
    dims = [d_in, *hidden_sizes, 1]
    params = []
    for i in range(len(dims) - 1):
        key, kw, kb = jax.random.split(key, 3)
        fan_in = dims[i]
        bound = 1.0 / jnp.sqrt(fan_in)
        w = jax.random.uniform(kw, (dims[i], dims[i + 1]),
                               minval=-bound, maxval=bound, dtype=jnp.float32)
        b = jax.random.uniform(kb, (1, dims[i + 1]),
                               minval=-bound, maxval=bound, dtype=jnp.float32)
        params.extend([w, b])
    return tuple(params)


def critic_forward_ref(obs_all, act_all, params):
    """Pure-JAX reference for verification."""
    w1, b1, w2, b2, w3, b3 = params
    x = jnp.concatenate([obs_all, act_all], axis=-1)
    h1 = jnp.maximum(x @ w1 + b1, 0.0)
    h2 = jnp.maximum(h1 @ w2 + b2, 0.0)
    return h2 @ w3 + b3


if __name__ == "__main__":
    key = jax.random.PRNGKey(0)
    B = 16                 # small demo batch (padded to 128 lanes internally)
    total_obs_dim = 12     # e.g. 3 agents x 4-dim obs
    total_act_dim = 4      # e.g. 2 agents x 2-dim act
    hidden_sizes = (256, 256)   # module default

    key, k_obs, k_act, k_par = jax.random.split(key, 4)
    obs_all = jax.random.normal(k_obs, (B, total_obs_dim), dtype=jnp.float32)
    act_all = jax.random.normal(k_act, (B, total_act_dim), dtype=jnp.float32)
    params = init_critic_params(k_par, total_obs_dim, total_act_dim,
                                hidden_sizes)

    q_ref = critic_forward_ref(obs_all, act_all, params)

    # f32 matmul path (tight check).
    q_f32 = jax.block_until_ready(
        critic_forward(obs_all, act_all, params, compute_dtype=jnp.float32))
    assert q_f32.shape == (B, 1)
    assert jnp.allclose(q_f32, q_ref, atol=1e-3, rtol=1e-3), "f32 mismatch"

    # bf16 operand path (default; native MXU rate; f32 accumulation).
    q_bf16 = jax.block_until_ready(
        critic_forward(obs_all, act_all, params))
    assert q_bf16.shape == (B, 1)
    assert jnp.allclose(q_bf16, q_ref, atol=5e-2, rtol=5e-2), "bf16 mismatch"

    print("KERNEL_OK")
</pallas_src>

<mosaic_0001>
module attributes {stable_mosaic.version = 11 : i64} {
  func.func @critic_mlp_kernel(%arg0: i32, %arg1: memref<128x16xf32, #tpu.memory_space<vmem>>, %arg2: memref<16x256xf32, #tpu.memory_space<vmem>>, %arg3: memref<1x256xf32, #tpu.memory_space<vmem>>, %arg4: memref<256x256xf32, #tpu.memory_space<vmem>>, %arg5: memref<1x256xf32, #tpu.memory_space<vmem>>, %arg6: memref<1x256xf32, #tpu.memory_space<vmem>>, %arg7: memref<1x1xf32, #tpu.memory_space<vmem>>, %arg8: memref<1x128xf32, #tpu.memory_space<vmem>>) attributes {dimension_semantics = [#tpu.dimension_semantics<parallel>], iteration_bounds = array<i64: 1>, scalar_prefetch = 0 : i64, scratch_operands = 0 : i64, tpu.core_type = #tpu.core_type<tc>, window_params = [{transform_indices = @transform_0, window_bounds = array<i64: 128, 16>}, {pipeline_mode = #tpu.pipeline_mode<synchronous>, transform_indices = @transform_1, window_bounds = array<i64: 16, 256>}, {pipeline_mode = #tpu.pipeline_mode<synchronous>, transform_indices = @transform_2, window_bounds = array<i64: 1, 256>}, {pipeline_mode = #tpu.pipeline_mode<synchronous>, transform_indices = @transform_3, window_bounds = array<i64: 256, 256>}, {pipeline_mode = #tpu.pipeline_mode<synchronous>, transform_indices = @transform_4, window_bounds = array<i64: 1, 256>}, {pipeline_mode = #tpu.pipeline_mode<synchronous>, transform_indices = @transform_5, window_bounds = array<i64: 1, 256>}, {pipeline_mode = #tpu.pipeline_mode<synchronous>, transform_indices = @transform_6, window_bounds = array<i64: 1, 1>}, {transform_indices = @transform_7, window_bounds = array<i64: 1, 128>}]} {
    %c0 = arith.constant 0 : index
    %c0_0 = arith.constant 0 : index
    %0 = vector.load %arg1[%c0, %c0_0] : memref<128x16xf32, #tpu.memory_space<vmem>>, vector<128x16xf32>
    %c0_1 = arith.constant 0 : index
    %c0_2 = arith.constant 0 : index
    %1 = vector.load %arg2[%c0_1, %c0_2] : memref<16x256xf32, #tpu.memory_space<vmem>>, vector<16x256xf32>
    %cst = arith.constant dense<0.000000e+00> : vector<128x256xf32>
    %2 = tpu.matmul %0, %1, %cst {dimension_numbers = #tpu.dot_dimension_numbers<[1], [0], [0], [1], [0, 0, 1, 1], [], []>} : vector<128x16xf32>, vector<16x256xf32>, vector<128x256xf32> -> vector<128x256xf32>
    %c0_3 = arith.constant 0 : index
    %c0_4 = arith.constant 0 : index
    %3 = vector.load %arg3[%c0_3, %c0_4] : memref<1x256xf32, #tpu.memory_space<vmem>>, vector<1x256xf32>
    %4 = vector.broadcast %3 : vector<1x256xf32> to vector<128x256xf32>
    %5 = arith.addf %2, %4 : vector<128x256xf32>
    %cst_5 = arith.constant 0.000000e+00 : f32
    %6 = vector.broadcast %cst_5 : f32 to vector<128x256xf32>
    %7 = arith.maximumf %5, %6 : vector<128x256xf32>
    %c0_6 = arith.constant 0 : index
    %c0_7 = arith.constant 0 : index
    %8 = vector.load %arg4[%c0_6, %c0_7] : memref<256x256xf32, #tpu.memory_space<vmem>>, vector<256x256xf32>
    %cst_8 = arith.constant dense<0.000000e+00> : vector<128x256xf32>
    %9 = tpu.matmul %7, %8, %cst_8 {dimension_numbers = #tpu.dot_dimension_numbers<[1], [0], [0], [1], [0, 0, 1, 1], [], []>} : vector<128x256xf32>, vector<256x256xf32>, vector<128x256xf32> -> vector<128x256xf32>
    %c0_9 = arith.constant 0 : index
    %c0_10 = arith.constant 0 : index
    %10 = vector.load %arg5[%c0_9, %c0_10] : memref<1x256xf32, #tpu.memory_space<vmem>>, vector<1x256xf32>
    %11 = vector.broadcast %10 : vector<1x256xf32> to vector<128x256xf32>
    %12 = arith.addf %9, %11 : vector<128x256xf32>
    %cst_11 = arith.constant 0.000000e+00 : f32
    %13 = vector.broadcast %cst_11 : f32 to vector<128x256xf32>
    %14 = arith.maximumf %12, %13 : vector<128x256xf32>
    %c0_12 = arith.constant 0 : index
    %c0_13 = arith.constant 0 : index
    %15 = vector.load %arg6[%c0_12, %c0_13] : memref<1x256xf32, #tpu.memory_space<vmem>>, vector<1x256xf32>
    %16 = vector.broadcast %15 : vector<1x256xf32> to vector<128x256xf32>
    %17 = arith.mulf %14, %16 : vector<128x256xf32>
    %cst_14 = arith.constant dense<0.000000e+00> : vector<128xf32>
    %18 = vector.multi_reduction <add>, %17, %cst_14 [1] : vector<128x256xf32> to vector<128xf32>
    %19 = vector.shape_cast %18 : vector<128xf32> to vector<128x1xf32>
    %20 = tpu.transpose %19, [1, 0] : vector<128x1xf32> -> vector<1x128xf32>
    %c0_15 = arith.constant 0 : index
    %c0_16 = arith.constant 0 : index
    %21 = vector.load %arg7[%c0_15, %c0_16] : memref<1x1xf32, #tpu.memory_space<vmem>>, vector<1x1xf32>
    %22 = vector.broadcast %21 : vector<1x1xf32> to vector<1x128xf32>
    %23 = arith.addf %20, %22 : vector<1x128xf32>
    %c0_17 = arith.constant 0 : index
    %c0_18 = arith.constant 0 : index
    %24 = vector.load %arg8[%c0_17, %c0_18] : memref<1x128xf32, #tpu.memory_space<vmem>>, vector<1x128xf32>
    tpu.vector_store %arg8[%c0_17, %c0_18], %23 {strides = array<i32>} : memref<1x128xf32, #tpu.memory_space<vmem>>, vector<1x128xf32>,
    return
  }
  func.func @transform_0(%arg0: i32) -> (i32, i32) {
    %c0_i32 = arith.constant 0 : i32
    %c0_i32_0 = arith.constant 0 : i32
    return %arg0, %c0_i32 : i32, i32
  }
  func.func @transform_1(%arg0: i32) -> (i32, i32) {
    %c0_i32 = arith.constant 0 : i32
    %c0_i32_0 = arith.constant 0 : i32
    %c0_i32_1 = arith.constant 0 : i32
    return %c0_i32, %c0_i32_0 : i32, i32
  }
  func.func @transform_2(%arg0: i32) -> (i32, i32) {
    %c0_i32 = arith.constant 0 : i32
    %c0_i32_0 = arith.constant 0 : i32
    %c0_i32_1 = arith.constant 0 : i32
    return %c0_i32, %c0_i32_0 : i32, i32
  }
  func.func @transform_3(%arg0: i32) -> (i32, i32) {
    %c0_i32 = arith.constant 0 : i32
    %c0_i32_0 = arith.constant 0 : i32
    %c0_i32_1 = arith.constant 0 : i32
    return %c0_i32, %c0_i32_0 : i32, i32
  }
  func.func @transform_4(%arg0: i32) -> (i32, i32) {
    %c0_i32 = arith.constant 0 : i32
    %c0_i32_0 = arith.constant 0 : i32
    %c0_i32_1 = arith.constant 0 : i32
    return %c0_i32, %c0_i32_0 : i32, i32
  }
  func.func @transform_5(%arg0: i32) -> (i32, i32) {
    %c0_i32 = arith.constant 0 : i32
    %c0_i32_0 = arith.constant 0 : i32
    %c0_i32_1 = arith.constant 0 : i32
    return %c0_i32, %c0_i32_0 : i32, i32
  }
  func.func @transform_6(%arg0: i32) -> (i32, i32) {
    %c0_i32 = arith.constant 0 : i32
    %c0_i32_0 = arith.constant 0 : i32
    %c0_i32_1 = arith.constant 0 : i32
    return %c0_i32, %c0_i32_0 : i32, i32
  }
  func.func @transform_7(%arg0: i32) -> (i32, i32) {
    %c0_i32 = arith.constant 0 : i32
    %c0_i32_0 = arith.constant 0 : i32
    return %c0_i32, %arg0 : i32, i32
  }
}

</mosaic_0001>

<llo_original>
// kernel: tpu_custom_call.1
$region0: #{tpu_custom_call.1}
  #allocation0 [shape = 'u32[]', space=smem, size = 0x4, offset = 0x4, fixed_abs, tag = 'smem constant byte address 0x4 - core index']
  #allocation1 [shape = 'u32[144,128]{1,0:T(1,128)}', space=vmem, size = 0x12000, scoped, tag = 'internal scratch']
  #allocation2 [shape = 'f32[1,1]{1,0:T(1,128)S(1)}', space=vmem, size = 0x200, scoped, tag = 'scoped memory for tpu_custom_call.1']
  %s0 = inlined_call_operand.vmem [shape: f32[128,16], index: 0, kind: input, shape index: {}]
  %s1 = inlined_call_operand.vmem [shape: f32[16,256], index: 1, kind: input, shape index: {}]
  %s2 = inlined_call_operand.vmem [shape: f32[1,256], index: 2, kind: input, shape index: {}]
  %s3 = inlined_call_operand.hbm [shape: f32[256,256], index: 3, kind: input, shape index: {}]
  %s4 = inlined_call_operand.vmem [shape: f32[1,256], index: 4, kind: input, shape index: {}]
  %s5 = inlined_call_operand.vmem [shape: f32[1,256], index: 5, kind: input, shape index: {}]
  %s6 = inlined_call_operand.<no memory space> [shape: f32[1,1], index: 6, kind: input, shape index: {}]
  %s7 = inlined_call_operand.hbm [shape: f32[1,128], index: 7, kind: output, shape index: {}]
  %s8 = sld [smem:[#allocation0]]
  $region42: #{tpu_custom_call.1} parent=0
    _
  %s10 = ssub.s32 1, %s8
  %s11 = scalar_select 0, %s10, %s8
  %v12 = vstv %s6
  %13 = vst [vmem:[#allocation2] sm:$0x1] %v12
  $region1: #{tpu_custom_call.1} parent=0
    #allocation3 [shape = 'u8[262144]{0}', space=vmem, size = 0x40000, scoped, tag = 'input window, operand 3, single buffered']
    #allocation4 [shape = 's32[1]{0}', space=sflag, size = 0x4, scoped, tag = 'scoped memory for tpu_custom_call.1']
    #allocation5 [shape = 's32[1]{0}', space=sflag, size = 0x4, scoped, tag = 'scoped memory for tpu_custom_call.1']
    #allocation6 [shape = 'u8[512]{0}', space=vmem, size = 0x400, scoped, tag = 'output window, operand 0, single buffered']
    %14 = vsyncpa [#allocation4], 0
    %15 = vsyncpa [#allocation5], 0
    // Predicated region
    $region2: #{tpu_custom_call.1} parent=1 // pred_check
      _
    $region3: #{tpu_custom_call.1} parent=1 // pred_check_branch
      %17 = sbr.rel (0) target = $region5
    $region4: #{tpu_custom_call.1} parent=1 // pred_region
      _
    $region5: #{tpu_custom_call.1} parent=1 // pred_fallthru
      _
    // Predicated region
    $region6: #{tpu_custom_call.1} parent=1 // pred_check
      _
    $region7: #{tpu_custom_call.1} parent=1 // pred_check_branch
      %19 = sbr.rel (0) target = $region9
    $region8: #{tpu_custom_call.1} parent=1 // pred_region
      _
    $region9: #{tpu_custom_call.1} parent=1 // pred_fallthru
      _
    // Predicated region
    $region10: #{tpu_custom_call.1} parent=1 // pred_check
      _
    $region11: #{tpu_custom_call.1} parent=1 // pred_check_branch
      %21 = sbr.rel (0) target = $region13
    $region12: #{tpu_custom_call.1} parent=1 // pred_region
      _
    $region13: #{tpu_custom_call.1} parent=1 // pred_fallthru
      _
    // Predicated region
    $region14: #{tpu_custom_call.1} parent=1 // pred_check
      _
    $region15: #{tpu_custom_call.1} parent=1 // pred_check_branch
      %23 = sbr.rel (0) target = $region17
    $region16: #{tpu_custom_call.1} parent=1 // pred_region
      %s25 = ssub.s32 8192, 8192
      %26 = vsyncadd [#allocation4], %s25
      %s27 = sshll.u32 [#allocation3], 4
      %s28 = int_to_ptr.vmem [resolvable:$true] %s27
      %33 = dma.hbm_to_vmem [thread:$0]  %s3, 8192, %s28, [#allocation4], 256, 256, 16
    $region17: #{tpu_custom_call.1} parent=1 // pred_fallthru
      _
    // Predicated region
    $region18: #{tpu_custom_call.1} parent=1 // pred_check
      _
    $region19: #{tpu_custom_call.1} parent=1 // pred_check_branch
      %35 = sbr.rel (0) target = $region21
    $region20: #{tpu_custom_call.1} parent=1 // pred_region
      _
    $region21: #{tpu_custom_call.1} parent=1 // pred_fallthru
      _
    // Predicated region
    $region22: #{tpu_custom_call.1} parent=1 // pred_check
      _
    $region23: #{tpu_custom_call.1} parent=1 // pred_check_branch
      %37 = sbr.rel (0) target = $region25
    $region24: #{tpu_custom_call.1} parent=1 // pred_region
      _
    $region25: #{tpu_custom_call.1} parent=1 // pred_fallthru
      _
    // Predicated region
    $region26: #{tpu_custom_call.1} parent=1 // pred_check
      _
    $region27: #{tpu_custom_call.1} parent=1 // pred_check_branch
      %39 = sbr.rel (0) target = $region29
    $region28: #{tpu_custom_call.1} parent=1 // pred_region
      _
    $region29: #{tpu_custom_call.1} parent=1 // pred_fallthru
      _
    // Predicated region
    $region30: #{tpu_custom_call.1} parent=1 // pred_check
      _
    $region31: #{tpu_custom_call.1} parent=1 // pred_check_branch
      %41 = sbr.rel (0) target = $region33
    $region32: #{tpu_custom_call.1} parent=1 // pred_region
      %42 = dma.done [#allocation4], 8192
    $region33: #{tpu_custom_call.1} parent=1 // pred_fallthru
      _
    %v43 = vld [vmem:[%s0] sm:$0xff]
    %v44 = vld [vmem:[%s0 + $0x8] sm:$0xff]
    %v45 = vld [vmem:[%s0 + $0x10] sm:$0xff]
    %v46 = vld [vmem:[%s0 + $0x18] sm:$0xff]
    %v47 = vld [vmem:[%s0 + $0x20] sm:$0xff]
    %v48 = vld [vmem:[%s0 + $0x28] sm:$0xff]
    %v49 = vld [vmem:[%s0 + $0x30] sm:$0xff]
    %v50 = vld [vmem:[%s0 + $0x38] sm:$0xff]
    %v51 = vld [vmem:[%s0 + $0x40] sm:$0xff]
    %v52 = vld [vmem:[%s0 + $0x48] sm:$0xff]
    %v53 = vld [vmem:[%s0 + $0x50] sm:$0xff]
    %v54 = vld [vmem:[%s0 + $0x58] sm:$0xff]
    %v55 = vld [vmem:[%s0 + $0x60] sm:$0xff]
    %v56 = vld [vmem:[%s0 + $0x68] sm:$0xff]
    %v57 = vld [vmem:[%s0 + $0x70] sm:$0xff]
    %v58 = vld [vmem:[%s0 + $0x78] sm:$0xff]
    %v59 = vld [vmem:[%s1] sm:$0xff]
    %v60 = vld [vmem:[%s1 + $0x8] sm:$0xff]
    %v61 = vld [vmem:[%s1 + $0x10] sm:$0xff]
    %v62 = vld [vmem:[%s1 + $0x18] sm:$0xff]
    %v63 = vld [vmem:[%s2] sm:$0x3]
    %v65 = vlaneseq
    %v66 = vshrl.u32 %v65, 7
    %v67 = vsub.s32 0, %v66
    %v68 = vrot.slane %v63, %v67
    %v69 = vlaneseq
    %v70 = vshrl.u32 %v69, 7
    %v71 = vsub.s32 1, %v70
    %v72 = vrot.slane %v63, %v71
    %vm75 = vcmask 130048
    %v77 = vsel %vm75, %v43, 0
    %v80 = vsel %vm75, %v44, 0
    %v83 = vsel %vm75, %v45, 0
    %v86 = vsel %vm75, %v46, 0
    %v89 = vsel %vm75, %v47, 0
    %v92 = vsel %vm75, %v48, 0
    %v95 = vsel %vm75, %v49, 0
    %v98 = vsel %vm75, %v50, 0
    %v101 = vsel %vm75, %v51, 0
    %v104 = vsel %vm75, %v52, 0
    %v107 = vsel %vm75, %v53, 0
    %v110 = vsel %vm75, %v54, 0
    %v113 = vsel %vm75, %v55, 0
    %v116 = vsel %vm75, %v56, 0
    %v119 = vsel %vm75, %v57, 0
    %v122 = vsel %vm75, %v58, 0
    %124 = vmatprep.subr.mxu0 %v60
    %125 = vmatpush1.msra.mxu0 %v59
    %126 = vmatprep.subr.mxu0 %v62
    %127 = vmatpush1.msra.mxu0 %v61
    %128 = vmatprep.subr.mxu0 0.0
    %129 = vmatpush1.msra.mxu0 0.0
    %130 = vmatprep.subr.mxu0 0.0
    %131 = vmatpush1.msra.mxu0 0.0
    %132 = vmatprep.subr.mxu0 0.0
    %133 = vmatpush1.msra.mxu0 0.0
    %134 = vmatprep.subr.mxu0 0.0
    %135 = vmatpush1.msra.mxu0 0.0
    %136 = vmatprep.subr.mxu0 0.0
    %137 = vmatpush1.msra.mxu0 0.0
    %138 = vmatprep.subr.mxu0 0.0
    %139 = vmatpush1.msra.mxu0 0.0
    %140 = vmatprep.subr.mxu0 0.0
    %141 = vmatpush1.msra.mxu0 0.0
    %142 = vmatprep.subr.mxu0 0.0
    %143 = vmatpush1.msra.mxu0 0.0
    %144 = vmatprep.subr.mxu0 0.0
    %145 = vmatpush1.msra.mxu0 0.0
    %146 = vmatprep.subr.mxu0 0.0
    %147 = vmatpush1.msra.mxu0 0.0
    %148 = vmatprep.subr.mxu0 0.0
    %149 = vmatpush1.msra.mxu0 0.0
    %150 = vmatprep.subr.mxu0 0.0
    %151 = vmatpush1.msra.mxu0 0.0
    %152 = vmatprep.subr.mxu0 0.0
    %153 = vmatpush1.msra.mxu0 0.0
    %154 = vmatprep.subr.mxu0 0.0
    %155 = vmatpush1.msra.mxu0 0.0
    %156 = vmatprep.subr.mxu0 0.0
    %157 = vmatpush1.msra.mxu0 0.0
    %158 = vmatprep.subr.mxu0 0.0
    %159 = vmatpush1.msra.mxu0 0.0
    %160 = vmatprep.subr.mxu0 0.0
    %161 = vmatpush1.msra.mxu0 0.0
    %162 = vmatprep.subr.mxu0 0.0
    %163 = vmatpush1.msra.mxu0 0.0
    %164 = vmatprep.subr.mxu0 0.0
    %165 = vmatpush1.msra.mxu0 0.0
    %166 = vmatprep.subr.mxu0 0.0
    %167 = vmatpush1.msra.mxu0 0.0
    %168 = vmatprep.subr.mxu0 0.0
    %169 = vmatpush1.msra.mxu0 0.0
    %170 = vmatprep.subr.mxu0 0.0
    %171 = vmatpush1.msra.mxu0 0.0
    %172 = vmatprep.subr.mxu0 0.0
    %173 = vmatpush1.msra.mxu0 0.0
    %174 = vmatprep.subr.mxu0 0.0
    %175 = vmatpush1.msra.mxu0 0.0
    %176 = vmatprep.subr.mxu0 0.0
    %177 = vmatpush1.msra.mxu0 0.0
    %178 = vmatprep.subr.mxu0 0.0
    %179 = vmatpush1.msra.mxu0 0.0
    %180 = vmatprep.subr.mxu0 0.0
    %181 = vmatpush1.msra.mxu0 0.0
    %182 = vmatprep.subr.mxu0 0.0
    %183 = vmatpush1.msra.mxu0 0.0
    %184 = vmatprep.subr.mxu0 0.0
    %185 = vmatpush1.msra.mxu0 0.0
    %186 = vmatprep.subr.mxu0 0.0
    %187 = vmatpush1.msra.mxu0 0.0
    %188 = vmatprep.mubr.f32.mxu0 0.0
    %189 = vmatmul.mubr.f32.gmra.mrb[0].mxu0 %v77
    %v190 = vpop.f32.mrb[0].mxu0
    %v191 = vadd.f32 %v68, %v190
    %v192 = vpop.f32.mrb[0].mxu0
    %v193 = vadd.f32 %v72, %v192
    %194 = vmatprep.mubr.f32.mxu0 0.0
    %195 = vmatmul.mubr.f32.gmra.mrb[0].mxu0 %v80
    %v196 = vpop.f32.mrb[0].mxu0
    %v197 = vadd.f32 %v68, %v196
    %v198 = vpop.f32.mrb[0].mxu0
    %v199 = vadd.f32 %v72, %v198
    %200 = vmatprep.mubr.f32.mxu0 0.0
    %201 = vmatmul.mubr.f32.gmra.mrb[0].mxu0 %v83
    %v202 = vpop.f32.mrb[0].mxu0
    %v203 = vadd.f32 %v68, %v202
    %v204 = vpop.f32.mrb[0].mxu0
    %v205 = vadd.f32 %v72, %v204
    %206 = vmatprep.mubr.f32.mxu0 0.0
    %207 = vmatmul.mubr.f32.gmra.mrb[0].mxu0 %v86
    %v208 = vpop.f32.mrb[0].mxu0
    %v209 = vadd.f32 %v68, %v208
    %v210 = vpop.f32.mrb[0].mxu0
    %v211 = vadd.f32 %v72, %v210
    %212 = vmatprep.mubr.f32.mxu0 0.0
    %213 = vmatmul.mubr.f32.gmra.mrb[0].mxu0 %v89
    %v214 = vpop.f32.mrb[0].mxu0
    %v215 = vadd.f32 %v68, %v214
    %v216 = vpop.f32.mrb[0].mxu0
    %v217 = vadd.f32 %v72, %v216
    %218 = vmatprep.mubr.f32.mxu0 0.0
    %219 = vmatmul.mubr.f32.gmra.mrb[0].mxu0 %v92
    %v220 = vpop.f32.mrb[0].mxu0
    %v221 = vadd.f32 %v68, %v220
    %v222 = vpop.f32.mrb[0].mxu0
    %v223 = vadd.f32 %v72, %v222
    %224 = vmatprep.mubr.f32.mxu0 0.0
    %225 = vmatmul.mubr.f32.gmra.mrb[0].mxu0 %v95
    %v226 = vpop.f32.mrb[0].mxu0
    %v227 = vadd.f32 %v68, %v226
    %v228 = vpop.f32.mrb[0].mxu0
    %v229 = vadd.f32 %v72, %v228
    %230 = vmatprep.mubr.f32.mxu0 0.0
    %231 = vmatmul.mubr.f32.gmra.mrb[0].mxu0 %v98
    %v232 = vpop.f32.mrb[0].mxu0
    %v233 = vadd.f32 %v68, %v232
    %v234 = vpop.f32.mrb[0].mxu0
    %v235 = vadd.f32 %v72, %v234
    %236 = vmatprep.mubr.f32.mxu0 0.0
    %237 = vmatmul.mubr.f32.gmra.mrb[0].mxu0 %v101
    %v238 = vpop.f32.mrb[0].mxu0
    %v239 = vadd.f32 %v68, %v238
    %v240 = vpop.f32.mrb[0].mxu0
    %v241 = vadd.f32 %v72, %v240
    %242 = vmatprep.mubr.f32.mxu0 0.0
    %243 = vmatmul.mubr.f32.gmra.mrb[0].mxu0 %v104
    %v244 = vpop.f32.mrb[0].mxu0
    %v245 = vadd.f32 %v68, %v244
    %v246 = vpop.f32.mrb[0].mxu0
    %v247 = vadd.f32 %v72, %v246
    %248 = vmatprep.mubr.f32.mxu0 0.0
    %249 = vmatmul.mubr.f32.gmra.mrb[0].mxu0 %v107
    %v250 = vpop.f32.mrb[0].mxu0
    %v251 = vadd.f32 %v68, %v250
    %v252 = vpop.f32.mrb[0].mxu0
    %v253 = vadd.f32 %v72, %v252
    %254 = vmatprep.mubr.f32.mxu0 0.0
    %255 = vmatmul.mubr.f32.gmra.mrb[0].mxu0 %v110
    %v256 = vpop.f32.mrb[0].mxu0
    %v257 = vadd.f32 %v68, %v256
    %v258 = vpop.f32.mrb[0].mxu0
    %v259 = vadd.f32 %v72, %v258
    %260 = vmatprep.mubr.f32.mxu0 0.0
    %261 = vmatmul.mubr.f32.gmra.mrb[0].mxu0 %v113
    %v262 = vpop.f32.mrb[0].mxu0
    %v263 = vadd.f32 %v68, %v262
    %v264 = vpop.f32.mrb[0].mxu0
    %v265 = vadd.f32 %v72, %v264
    %266 = vmatprep.mubr.f32.mxu0 0.0
    %267 = vmatmul.mubr.f32.gmra.mrb[0].mxu0 %v116
    %v268 = vpop.f32.mrb[0].mxu0
    %v269 = vadd.f32 %v68, %v268
    %v270 = vpop.f32.mrb[0].mxu0
    %v271 = vadd.f32 %v72, %v270
    %272 = vmatprep.mubr.f32.mxu0 0.0
    %273 = vmatmul.mubr.f32.gmra.mrb[0].mxu0 %v119
    %v274 = vpop.f32.mrb[0].mxu0
    %v275 = vadd.f32 %v68, %v274
    %v276 = vpop.f32.mrb[0].mxu0
    %v277 = vadd.f32 %v72, %v276
    %278 = vmatprep.mubr.f32.mxu0 0.0
    %279 = vmatmul.mubr.f32.gmra.mrb[0].mxu0 %v122
    %v280 = vpop.f32.mrb[0].mxu0
    %v281 = vadd.f32 %v68, %v280
    %v282 = vpop.f32.mrb[0].mxu0
    %v283 = vadd.f32 %v72, %v282
    %284 = vdwg.mxu0
    %v285 = vmax.f32 %v191, 0.0
    %v286 = vmax.f32 %v193, 0.0
    %v287 = vmax.f32 %v197, 0.0
    %v288 = vmax.f32 %v199, 0.0
    %v289 = vmax.f32 %v203, 0.0
    %v290 = vmax.f32 %v205, 0.0
    %v291 = vmax.f32 %v209, 0.0
    %v292 = vmax.f32 %v211, 0.0
    %v293 = vmax.f32 %v215, 0.0
    %v294 = vmax.f32 %v217, 0.0
    %v295 = vmax.f32 %v221, 0.0
    %v296 = vmax.f32 %v223, 0.0
    %v297 = vmax.f32 %v227, 0.0
    %v298 = vmax.f32 %v229, 0.0
    %v299 = vmax.f32 %v233, 0.0
    %v300 = vmax.f32 %v235, 0.0
    %v301 = vmax.f32 %v239, 0.0
    %v302 = vmax.f32 %v241, 0.0
    %v303 = vmax.f32 %v245, 0.0
    %v304 = vmax.f32 %v247, 0.0
    %v305 = vmax.f32 %v251, 0.0
    %v306 = vmax.f32 %v253, 0.0
    %v307 = vmax.f32 %v257, 0.0
    %v308 = vmax.f32 %v259, 0.0
    %v309 = vmax.f32 %v263, 0.0
    %v310 = vmax.f32 %v265, 0.0
    %v311 = vmax.f32 %v269, 0.0
    %v312 = vmax.f32 %v271, 0.0
    %v313 = vmax.f32 %v275, 0.0
    %v314 = vmax.f32 %v277, 0.0
    %v315 = vmax.f32 %v281, 0.0
    %v316 = vmax.f32 %v283, 0.0
    %v317 = vld [vmem:[#allocation3] sm:$0xff]
    %v318 = vld [vmem:[#allocation3 + $0x8] sm:$0xff]
    %v319 = vld [vmem:[#allocation3 + $0x10] sm:$0xff]
    %v320 = vld [vmem:[#allocation3 + $0x18] sm:$0xff]
    %v321 = vld [vmem:[#allocation3 + $0x20] sm:$0xff]
    %v322 = vld [vmem:[#allocation3 + $0x28] sm:$0xff]
    %v323 = vld [vmem:[#allocation3 + $0x30] sm:$0xff]
    %v324 = vld [vmem:[#allocation3 + $0x38] sm:$0xff]
    %v325 = vld [vmem:[#allocation3 + $0x40] sm:$0xff]
    %v326 = vld [vmem:[#allocation3 + $0x48] sm:$0xff]
    %v327 = vld [vmem:[#allocation3 + $0x50] sm:$0xff]
    %v328 = vld [vmem:[#allocation3 + $0x58] sm:$0xff]
    %v329 = vld [vmem:[#allocation3 + $0x60] sm:$0xff]
    %v330 = vld [vmem:[#allocation3 + $0x68] sm:$0xff]
    %v331 = vld [vmem:[#allocation3 + $0x70] sm:$0xff]
    %v332 = vld [vmem:[#allocation3 + $0x78] sm:$0xff]
    %v333 = vld [vmem:[#allocation3 + $0x80] sm:$0xff]
    %v334 = vld [vmem:[#allocation3 + $0x88] sm:$0xff]
    %v335 = vld [vmem:[#allocation3 + $0x90] sm:$0xff]
    %v336 = vld [vmem:[#allocation3 + $0x98] sm:$0xff]
    %v337 = vld [vmem:[#allocation3 + $0xa0] sm:$0xff]
    %v338 = vld [vmem:[#allocation3 + $0xa8] sm:$0xff]
    %v339 = vld [vmem:[#allocation3 + $0xb0] sm:$0xff]
    %v340 = vld [vmem:[#allocation3 + $0xb8] sm:$0xff]
    %v341 = vld [vmem:[#allocation3 + $0xc0] sm:$0xff]
    %v342 = vld [vmem:[#allocation3 + $0xc8] sm:$0xff]
    %v343 = vld [vmem:[#allocation3 + $0xd0] sm:$0xff]
    %v344 = vld [vmem:[#allocation3 + $0xd8] sm:$0xff]
    %v345 = vld [vmem:[#allocation3 + $0xe0] sm:$0xff]
    %v346 = vld [vmem:[#allocation3 + $0xe8] sm:$0xff]
    %v347 = vld [vmem:[#allocation3 + $0xf0] sm:$0xff]
    %v348 = vld [vmem:[#allocation3 + $0xf8] sm:$0xff]
    %v349 = vld [vmem:[#allocation3 + $0x100] sm:$0xff]
    %v350 = vld [vmem:[#allocation3 + $0x108] sm:$0xff]
    %v351 = vld [vmem:[#allocation3 + $0x110] sm:$0xff]
    %v352 = vld [vmem:[#allocation3 + $0x118] sm:$0xff]
    %v353 = vld [vmem:[#allocation3 + $0x120] sm:$0xff]
    %v354 = vld [vmem:[#allocation3 + $0x128] sm:$0xff]
    %v355 = vld [vmem:[#allocation3 + $0x130] sm:$0xff]
    %v356 = vld [vmem:[#allocation3 + $0x138] sm:$0xff]
    %v357 = vld [vmem:[#allocation3 + $0x140] sm:$0xff]
    %v358 = vld [vmem:[#allocation3 + $0x148] sm:$0xff]
    %v359 = vld [vmem:[#allocation3 + $0x150] sm:$0xff]
    %v360 = vld [vmem:[#allocation3 + $0x158] sm:$0xff]
    %v361 = vld [vmem:[#allocation3 + $0x160] sm:$0xff]
    %v362 = vld [vmem:[#allocation3 + $0x168] sm:$0xff]
    %v363 = vld [vmem:[#allocation3 + $0x170] sm:$0xff]
    %v364 = vld [vmem:[#allocation3 + $0x178] sm:$0xff]
    %v365 = vld [vmem:[#allocation3 + $0x180] sm:$0xff]
    %v366 = vld [vmem:[#allocation3 + $0x188] sm:$0xff]
    %v367 = vld [vmem:[#allocation3 + $0x190] sm:$0xff]
    %v368 = vld [vmem:[#allocation3 + $0x198] sm:$0xff]
    %v369 = vld [vmem:[#allocation3 + $0x1a0] sm:$0xff]
    %v370 = vld [vmem:[#allocation3 + $0x1a8] sm:$0xff]
    %v371 = vld [vmem:[#allocation3 + $0x1b0] sm:$0xff]
    %v372 = vld [vmem:[#allocation3 + $0x1b8] sm:$0xff]
    %v373 = vld [vmem:[#allocation3 + $0x1c0] sm:$0xff]
    %v374 = vld [vmem:[#allocation3 + $0x1c8] sm:$0xff]
    %v375 = vld [vmem:[#allocation3 + $0x1d0] sm:$0xff]
    %v376 = vld [vmem:[#allocation3 + $0x1d8] sm:$0xff]
    %v377 = vld [vmem:[#allocation3 + $0x1e0] sm:$0xff]
    %v378 = vld [vmem:[#allocation3 + $0x1e8] sm:$0xff]
    %v379 = vld [vmem:[#allocation3 + $0x1f0] sm:$0xff]
    %v380 = vld [vmem:[#allocation3 + $0x1f8] sm:$0xff]
    %v381 = vld [vmem:[%s4] sm:$0x3]
    %v383 = vlaneseq
    %v384 = vshrl.u32 %v383, 7
    %v385 = vsub.s32 0, %v384
    %v386 = vrot.slane %v381, %v385
    %v387 = vlaneseq
    %v388 = vshrl.u32 %v387, 7
    %v389 = vsub.s32 1, %v388
    %v390 = vrot.slane %v381, %v389
    %393 = vmatprep.subr.mxu0 %v318
    %394 = vmatpush1.msra.mxu0 %v317
    %395 = vmatprep.subr.mxu0 %v320
    %396 = vmatpush1.msra.mxu0 %v319
    %397 = vmatprep.subr.mxu0 %v322
    %398 = vmatpush1.msra.mxu0 %v321
    %399 = vmatprep.subr.mxu0 %v324
    %400 = vmatpush1.msra.mxu0 %v323
    %401 = vmatprep.subr.mxu0 %v326
    %402 = vmatpush1.msra.mxu0 %v325
    %403 = vmatprep.subr.mxu0 %v328
    %404 = vmatpush1.msra.mxu0 %v327
    %405 = vmatprep.subr.mxu0 %v330
    %406 = vmatpush1.msra.mxu0 %v329
    %407 = vmatprep.subr.mxu0 %v332
    %408 = vmatpush1.msra.mxu0 %v331
    %409 = vmatprep.subr.mxu0 %v334
    %410 = vmatpush1.msra.mxu0 %v333
    %411 = vmatprep.subr.mxu0 %v336
    %412 = vmatpush1.msra.mxu0 %v335
    %413 = vmatprep.subr.mxu0 %v338
    %414 = vmatpush1.msra.mxu0 %v337
    %415 = vmatprep.subr.mxu0 %v340
    %416 = vmatpush1.msra.mxu0 %v339
    %417 = vmatprep.subr.mxu0 %v342
    %418 = vmatpush1.msra.mxu0 %v341
    %419 = vmatprep.subr.mxu0 %v344
    %420 = vmatpush1.msra.mxu0 %v343
    %421 = vmatprep.subr.mxu0 %v346
    %422 = vmatpush1.msra.mxu0 %v345
    %423 = vmatprep.subr.mxu0 %v348
    %424 = vmatpush1.msra.mxu0 %v347
    %425 = vmatprep.subr.mxu0 %v350
    %426 = vmatpush1.msra.mxu0 %v349
    %427 = vmatprep.subr.mxu0 %v352
    %428 = vmatpush1.msra.mxu0 %v351
    %429 = vmatprep.subr.mxu0 %v354
    %430 = vmatpush1.msra.mxu0 %v353
    %431 = vmatprep.subr.mxu0 %v356
    %432 = vmatpush1.msra.mxu0 %v355
    %433 = vmatprep.subr.mxu0 %v358
    %434 = vmatpush1.msra.mxu0 %v357
    %435 = vmatprep.subr.mxu0 %v360
    %436 = vmatpush1.msra.mxu0 %v359
    %437 = vmatprep.subr.mxu0 %v362
    %438 = vmatpush1.msra.mxu0 %v361
    %439 = vmatprep.subr.mxu0 %v364
    %440 = vmatpush1.msra.mxu0 %v363
    %441 = vmatprep.subr.mxu0 %v366
    %442 = vmatpush1.msra.mxu0 %v365
    %443 = vmatprep.subr.mxu0 %v368
    %444 = vmatpush1.msra.mxu0 %v367
    %445 = vmatprep.subr.mxu0 %v370
    %446 = vmatpush1.msra.mxu0 %v369
    %447 = vmatprep.subr.mxu0 %v372
    %448 = vmatpush1.msra.mxu0 %v371
    %449 = vmatprep.subr.mxu0 %v374
    %450 = vmatpush1.msra.mxu0 %v373
    %451 = vmatprep.subr.mxu0 %v376
    %452 = vmatpush1.msra.mxu0 %v375
    %453 = vmatprep.subr.mxu0 %v378
    %454 = vmatpush1.msra.mxu0 %v377
    %455 = vmatprep.subr.mxu0 %v380
    %456 = vmatpush1.msra.mxu0 %v379
    %457 = vmatprep.mubr.f32.mxu0 %v286
    %458 = vmatmul.mubr.f32.gmra.mrb[0].mxu0 %v285
    %v459 = vpop.f32.mrb[0].mxu0
    %v460 = vadd.f32 %v386, %v459
    %v461 = vpop.f32.mrb[0].mxu0
    %v462 = vadd.f32 %v390, %v461
    %463 = vmatprep.mubr.f32.mxu0 %v288
    %464 = vmatmul.mubr.f32.gmra.mrb[0].mxu0 %v287
    %v465 = vpop.f32.mrb[0].mxu0
    %v466 = vadd.f32 %v386, %v465
    %v467 = vpop.f32.mrb[0].mxu0
    %v468 = vadd.f32 %v390, %v467
    %469 = vmatprep.mubr.f32.mxu0 %v290
    %470 = vmatmul.mubr.f32.gmra.mrb[0].mxu0 %v289
    %v471 = vpop.f32.mrb[0].mxu0
    %v472 = vadd.f32 %v386, %v471
    %v473 = vpop.f32.mrb[0].mxu0
    %v474 = vadd.f32 %v390, %v473
    %475 = vmatprep.mubr.f32.mxu0 %v292
    %476 = vmatmul.mubr.f32.gmra.mrb[0].mxu0 %v291
    %v477 = vpop.f32.mrb[0].mxu0
    %v478 = vadd.f32 %v386, %v477
    %v479 = vpop.f32.mrb[0].mxu0
    %v480 = vadd.f32 %v390, %v479
    %481 = vmatprep.mubr.f32.mxu0 %v294
    %482 = vmatmul.mubr.f32.gmra.mrb[0].mxu0 %v293
    %v483 = vpop.f32.mrb[0].mxu0
    %v484 = vadd.f32 %v386, %v483
    %v485 = vpop.f32.mrb[0].mxu0
    %v486 = vadd.f32 %v390, %v485
    %487 = vmatprep.mubr.f32.mxu0 %v296
    %488 = vmatmul.mubr.f32.gmra.mrb[0].mxu0 %v295
    %v489 = vpop.f32.mrb[0].mxu0
    %v490 = vadd.f32 %v386, %v489
    %v491 = vpop.f32.mrb[0].mxu0
    %v492 = vadd.f32 %v390, %v491
    %493 = vmatprep.mubr.f32.mxu0 %v298
    %494 = vmatmul.mubr.f32.gmra.mrb[0].mxu0 %v297
    %v495 = vpop.f32.mrb[0].mxu0
    %v496 = vadd.f32 %v386, %v495
    %v497 = vpop.f32.mrb[0].mxu0
    %v498 = vadd.f32 %v390, %v497
    %499 = vmatprep.mubr.f32.mxu0 %v300
    %500 = vmatmul.mubr.f32.gmra.mrb[0].mxu0 %v299
    %v501 = vpop.f32.mrb[0].mxu0
    %v502 = vadd.f32 %v386, %v501
    %v503 = vpop.f32.mrb[0].mxu0
    %v504 = vadd.f32 %v390, %v503
    %505 = vmatprep.mubr.f32.mxu0 %v302
    %506 = vmatmul.mubr.f32.gmra.mrb[0].mxu0 %v301
    %v507 = vpop.f32.mrb[0].mxu0
    %v508 = vadd.f32 %v386, %v507
    %v509 = vpop.f32.mrb[0].mxu0
    %v510 = vadd.f32 %v390, %v509
    %511 = vmatprep.mubr.f32.mxu0 %v304
    %512 = vmatmul.mubr.f32.gmra.mrb[0].mxu0 %v303
    %v513 = vpop.f32.mrb[0].mxu0
    %v514 = vadd.f32 %v386, %v513
    %v515 = vpop.f32.mrb[0].mxu0
    %v516 = vadd.f32 %v390, %v515
    %517 = vmatprep.mubr.f32.mxu0 %v306
    %518 = vmatmul.mubr.f32.gmra.mrb[0].mxu0 %v305
    %v519 = vpop.f32.mrb[0].mxu0
    %v520 = vadd.f32 %v386, %v519
    %v521 = vpop.f32.mrb[0].mxu0
    %v522 = vadd.f32 %v390, %v521
    %523 = vmatprep.mubr.f32.mxu0 %v308
    %524 = vmatmul.mubr.f32.gmra.mrb[0].mxu0 %v307
    %v525 = vpop.f32.mrb[0].mxu0
    %v526 = vadd.f32 %v386, %v525
    %v527 = vpop.f32.mrb[0].mxu0
    %v528 = vadd.f32 %v390, %v527
    %529 = vmatprep.mubr.f32.mxu0 %v310
    %530 = vmatmul.mubr.f32.gmra.mrb[0].mxu0 %v309
    %v531 = vpop.f32.mrb[0].mxu0
    %v532 = vadd.f32 %v386, %v531
    %v533 = vpop.f32.mrb[0].mxu0
    %v534 = vadd.f32 %v390, %v533
    %535 = vmatprep.mubr.f32.mxu0 %v312
    %536 = vmatmul.mubr.f32.gmra.mrb[0].mxu0 %v311
    %v537 = vpop.f32.mrb[0].mxu0
    %v538 = vadd.f32 %v386, %v537
    %v539 = vpop.f32.mrb[0].mxu0
    %v540 = vadd.f32 %v390, %v539
    %541 = vmatprep.mubr.f32.mxu0 %v314
    %542 = vmatmul.mubr.f32.gmra.mrb[0].mxu0 %v313
    %v543 = vpop.f32.mrb[0].mxu0
    %v544 = vadd.f32 %v386, %v543
    %v545 = vpop.f32.mrb[0].mxu0
    %v546 = vadd.f32 %v390, %v545
    %547 = vmatprep.mubr.f32.mxu0 %v316
    %548 = vmatmul.mubr.f32.gmra.mrb[0].mxu0 %v315
    %v549 = vpop.f32.mrb[0].mxu0
    %v550 = vadd.f32 %v386, %v549
    %v551 = vpop.f32.mrb[0].mxu0
    %v552 = vadd.f32 %v390, %v551
    %553 = vdwg.mxu0
    %v554 = vmax.f32 %v460, 0.0
    %v555 = vmax.f32 %v462, 0.0
    %v556 = vmax.f32 %v466, 0.0
    %v557 = vmax.f32 %v468, 0.0
    %v558 = vmax.f32 %v472, 0.0
    %v559 = vmax.f32 %v474, 0.0
    %v560 = vmax.f32 %v478, 0.0
    %v561 = vmax.f32 %v480, 0.0
    %v562 = vmax.f32 %v484, 0.0
    %v563 = vmax.f32 %v486, 0.0
    %v564 = vmax.f32 %v490, 0.0
    %v565 = vmax.f32 %v492, 0.0
    %v566 = vmax.f32 %v496, 0.0
    %v567 = vmax.f32 %v498, 0.0
    %v568 = vmax.f32 %v502, 0.0
    %v569 = vmax.f32 %v504, 0.0
    %v570 = vmax.f32 %v508, 0.0
    %v571 = vmax.f32 %v510, 0.0
    %v572 = vmax.f32 %v514, 0.0
    %v573 = vmax.f32 %v516, 0.0
    %v574 = vmax.f32 %v520, 0.0
    %v575 = vmax.f32 %v522, 0.0
    %v576 = vmax.f32 %v526, 0.0
    %v577 = vmax.f32 %v528, 0.0
    %v578 = vmax.f32 %v532, 0.0
    %v579 = vmax.f32 %v534, 0.0
    %v580 = vmax.f32 %v538, 0.0
    %v581 = vmax.f32 %v540, 0.0
    %v582 = vmax.f32 %v544, 0.0
    %v583 = vmax.f32 %v546, 0.0
    %v584 = vmax.f32 %v550, 0.0
    %v585 = vmax.f32 %v552, 0.0
    %v586 = vld [vmem:[%s5] sm:$0x3]
    %v588 = vlaneseq
    %v589 = vshrl.u32 %v588, 7
    %v590 = vsub.s32 0, %v589
    %v591 = vrot.slane %v586, %v590
    %v592 = vlaneseq
    %v593 = vshrl.u32 %v592, 7
    %v594 = vsub.s32 1, %v593
    %v595 = vrot.slane %v586, %v594
    %v598 = vmul.f32 %v554, %v591
    %v599 = vmul.f32 %v555, %v595
    %v600 = vmul.f32 %v556, %v591
    %v601 = vmul.f32 %v557, %v595
    %v602 = vmul.f32 %v558, %v591
    %v603 = vmul.f32 %v559, %v595
    %v604 = vmul.f32 %v560, %v591
    %v605 = vmul.f32 %v561, %v595
    %v606 = vmul.f32 %v562, %v591
    %v607 = vmul.f32 %v563, %v595
    %v608 = vmul.f32 %v564, %v591
    %v609 = vmul.f32 %v565, %v595
    %v610 = vmul.f32 %v566, %v591
    %v611 = vmul.f32 %v567, %v595
    %v612 = vmul.f32 %v568, %v591
    %v613 = vmul.f32 %v569, %v595
    %v614 = vmul.f32 %v570, %v591
    %v615 = vmul.f32 %v571, %v595
    %v616 = vmul.f32 %v572, %v591
    %v617 = vmul.f32 %v573, %v595
    %v618 = vmul.f32 %v574, %v591
    %v619 = vmul.f32 %v575, %v595
    %v620 = vmul.f32 %v576, %v591
    %v621 = vmul.f32 %v577, %v595
    %v622 = vmul.f32 %v578, %v591
    %v623 = vmul.f32 %v579, %v595
    %v624 = vmul.f32 %v580, %v591
    %v625 = vmul.f32 %v581, %v595
    %v626 = vmul.f32 %v582, %v591
    %v627 = vmul.f32 %v583, %v595
    %v628 = vmul.f32 %v584, %v591
    %v629 = vmul.f32 %v585, %v595
    %v630 = vadd.f32 %v598, %v599
    %631 = vadd.xlane.f32.xlu0 %v630
    %v632 = vpop.xlane.xlu0 %631
    %v633 = vadd.f32 %v600, %v601
    %634 = vadd.xlane.f32.xlu0 %v633
    %v635 = vpop.xlane.xlu0 %634
    %v636 = vadd.f32 %v602, %v603
    %637 = vadd.xlane.f32.xlu0 %v636
    %v638 = vpop.xlane.xlu0 %637
    %v639 = vadd.f32 %v604, %v605
    %640 = vadd.xlane.f32.xlu0 %v639
    %v641 = vpop.xlane.xlu0 %640
    %v642 = vadd.f32 %v606, %v607
    %643 = vadd.xlane.f32.xlu0 %v642
    %v644 = vpop.xlane.xlu0 %643
    %v645 = vadd.f32 %v608, %v609
    %646 = vadd.xlane.f32.xlu0 %v645
    %v647 = vpop.xlane.xlu0 %646
    %v648 = vadd.f32 %v610, %v611
    %649 = vadd.xlane.f32.xlu0 %v648
    %v650 = vpop.xlane.xlu0 %649
    %v651 = vadd.f32 %v612, %v613
    %652 = vadd.xlane.f32.xlu0 %v651
    %v653 = vpop.xlane.xlu0 %652
    %v654 = vadd.f32 %v614, %v615
    %655 = vadd.xlane.f32.xlu0 %v654
    %v656 = vpop.xlane.xlu0 %655
    %v657 = vadd.f32 %v616, %v617
    %658 = vadd.xlane.f32.xlu0 %v657
    %v659 = vpop.xlane.xlu0 %658
    %v660 = vadd.f32 %v618, %v619
    %661 = vadd.xlane.f32.xlu0 %v660
    %v662 = vpop.xlane.xlu0 %661
    %v663 = vadd.f32 %v620, %v621
    %664 = vadd.xlane.f32.xlu0 %v663
    %v665 = vpop.xlane.xlu0 %664
    %v666 = vadd.f32 %v622, %v623
    %667 = vadd.xlane.f32.xlu0 %v666
    %v668 = vpop.xlane.xlu0 %667
    %v669 = vadd.f32 %v624, %v625
    %670 = vadd.xlane.f32.xlu0 %v669
    %v671 = vpop.xlane.xlu0 %670
    %v672 = vadd.f32 %v626, %v627
    %673 = vadd.xlane.f32.xlu0 %v672
    %v674 = vpop.xlane.xlu0 %673
    %v675 = vadd.f32 %v628, %v629
    %676 = vadd.xlane.f32.xlu0 %v675
    %v677 = vpop.xlane.xlu0 %676
    %678 = vxpose.xlu0.b32.start [1/16] %v632, 128
    %679 = vxpose.xlu0.b32.cont [2/16] %v635, 128
    %680 = vxpose.xlu0.b32.cont [3/16] %v638, 128
    %681 = vxpose.xlu0.b32.cont [4/16] %v641, 128
    %682 = vxpose.xlu0.b32.cont [5/16] %v644, 128
    %683 = vxpose.xlu0.b32.cont [6/16] %v647, 128
    %684 = vxpose.xlu0.b32.cont [7/16] %v650, 128
    %685 = vxpose.xlu0.b32.cont [8/16] %v653, 128
    %686 = vxpose.xlu0.b32.cont [9/16] %v656, 128
    %687 = vxpose.xlu0.b32.cont [10/16] %v659, 128
    %688 = vxpose.xlu0.b32.cont [11/16] %v662, 128
    %689 = vxpose.xlu0.b32.cont [12/16] %v665, 128
    %690 = vxpose.xlu0.b32.cont [13/16] %v668, 128
    %691 = vxpose.xlu0.b32.cont [14/16] %v671, 128
    %692 = vxpose.xlu0.b32.cont [15/16] %v674, 128
    %693 = vxpose.xlu0.b32.end [16/16] %v677, 128
    %v694 = vpop.trf.xlu0
    %v695 = vpop.trf.xlu0
    %v696 = vpop.trf.xlu0
    %v697 = vpop.trf.xlu0
    %v698 = vpop.trf.xlu0
    %v699 = vpop.trf.xlu0
    %v700 = vpop.trf.xlu0
    %v701 = vpop.trf.xlu0
    %v702 = vpop.trf.xlu0
    %v703 = vpop.trf.xlu0
    %v704 = vpop.trf.xlu0
    %v705 = vpop.trf.xlu0
    %v706 = vpop.trf.xlu0
    %v707 = vpop.trf.xlu0
    %v708 = vpop.trf.xlu0
    %v709 = vpop.trf.xlu0
    %v710 = vld [vmem:[#allocation2] sm:$0x1]
    %712 = vset.pattern.permute.xlu0 0
    %713 = vperm.xlu0 %712, %v710
    %v714 = vpop.permute.xlu0 %713
    %v716 = vlaneseq
    %v717 = vshrl.u32 %v716, 7
    %v718 = vsub.s32 0, %v717
    %v719 = vrot.slane %v714, %v718
    %v720 = vadd.f32 %v694, %v719
    %721 = vst [vmem:[#allocation6] sm:$0x1] %v720
    // Predicated region
    $region34: #{tpu_custom_call.1} parent=1 // pred_check
      _
    $region35: #{tpu_custom_call.1} parent=1 // pred_check_branch
      %723 = sbr.rel (0) target = $region37
    $region36: #{tpu_custom_call.1} parent=1 // pred_region
      %s725 = ssub.s32 16, 16
      %726 = vsyncadd [#allocation5], %s725
      %s728 = sshll.u32 [#allocation6], 4
      %s729 = int_to_ptr.vmem [resolvable:$true] %s728
      %731 = dma.vmem_to_hbm [thread:$0]  %s729, 16, %s7, [#allocation5]
    $region37: #{tpu_custom_call.1} parent=1 // pred_fallthru
      _
    // Predicated region
    $region38: #{tpu_custom_call.1} parent=1 // pred_check
      _
    $region39: #{tpu_custom_call.1} parent=1 // pred_check_branch
      %733 = sbr.rel (0) target = $region41
    $region40: #{tpu_custom_call.1} parent=1 // pred_region
      %734 = dma.done [#allocation5], 16
    $region41: #{tpu_custom_call.1} parent=1 // pred_fallthru
      _
    %735 = vsyncpa [#allocation4], 1
    %736 = vsyncpa [#allocation5], 1

</llo_original>
